<compile_context>
chip_gen: v5e
topology: v5e:2x2
jax: 0.10.0
libtpu: 0.0.40
codegen_flags: <defaults>
</compile_context>

<pallas_src>
import jax
import jax.numpy as jnp
from jax.experimental import pallas as pl
from jax.experimental.pallas import tpu as pltpu


def _proj_kernel(x_ref, w_ref, b_ref, proj_ref):
    # x: (TP, D); w: (D, 2H) = [W_h.T | W_m.T]; b: (1, 2H) = [b_h | 0]
    proj_ref[...] = (
        jnp.dot(x_ref[...], w_ref[...], preferred_element_type=jnp.float32)
        + b_ref[...]
    ).astype(proj_ref.dtype)


def _pairwise_kernel(heads_ref, modsT_ref, w2_ref, b2_ref, out_ref):
    # heads: (TM, H)  -- head rows in sublanes
    # modsT: (H, TN)  -- mod columns lane-dense
    # w2: (H,) SMEM; b2: (1,) SMEM
    tm, h_dim = heads_ref.shape
    tn = modsT_ref.shape[1]

    acc = jnp.zeros((tm, tn), dtype=jnp.float32)
    # H-loop accumulation: each step is a full-width VPU broadcast-add / max /
    # scalar-fma on a lane-dense (TM, TN) tile; the live intermediate never
    # exceeds (TM, TN).
    # TODO(synk): for very large mlp_hidden_dim, chunk this statically
    # unrolled loop to bound generated code size.
    for h in range(h_dim):
        hb = heads_ref[:, h:h + 1]           # (TM, 1) -> broadcast across lanes
        mb = modsT_ref[h:h + 1, :]           # (1, TN) -> broadcast across sublanes
        acc = acc + w2_ref[h] * jnp.maximum(hb + mb, 0.0)

    out_ref[...] = (acc + b2_ref[0]).astype(out_ref.dtype)

    # Square aligned tiles: only diagonal tiles contain diagonal elements, so
    # the mask (iotas + compare + select) is skipped on off-diagonal tiles.
    @pl.when(pl.program_id(0) == pl.program_id(1))
    def _():
        ii = jax.lax.broadcasted_iota(jnp.int32, (tm, tn), 0)
        jj = jax.lax.broadcasted_iota(jnp.int32, (tm, tn), 1)
        out_ref[...] = jnp.where(ii == jj, -jnp.inf, out_ref[...])


def mlp_forward(lstm_out, w_h, b_h, w_m, w2, b2, *, tile=128):
    """scores = MLP(lstm_out); lstm_out (S, D), w_h/w_m (H, D), b_h (H,),
    w2 (1, H), b2 (1,). Returns (S, S) float32."""
    f32 = jnp.float32
    S, D = lstm_out.shape
    H = w_h.shape[0]

    # Pad the sentence length up to a multiple of the square tile so output
    # tiles are lane-dense and any S is supported.
    Sp = ((S + tile - 1) // tile) * tile
    x = jnp.asarray(lstm_out, f32)
    if Sp != S:
        x = jnp.pad(x, ((0, Sp - S), (0, 0)))

    # Fused projection operands (constant-folded): [W_h | W_m] and [b_h | 0].
    wcat_t = jnp.concatenate(
        [jnp.asarray(w_h, f32), jnp.asarray(w_m, f32)], axis=0).T       # (D, 2H)
    bcat = jnp.concatenate(
        [jnp.asarray(b_h, f32), jnp.zeros((H,), f32)]).reshape(1, 2 * H)

    vmem_limit = 32 * 1024 * 1024

    # --- Prologue: both projections, one fused (D, 2H) matmul per row tile ---
    proj = pl.pallas_call(
        _proj_kernel,
        out_shape=jax.ShapeDtypeStruct((Sp, 2 * H), f32),
        grid_spec=pltpu.PrefetchScalarGridSpec(
            num_scalar_prefetch=0,
            grid=(Sp // tile,),
            in_specs=[
                pl.BlockSpec((tile, D), lambda i: (i, 0)),      # lstm_out rows
                pl.BlockSpec((D, 2 * H), lambda i: (0, 0)),     # [W_h.T | W_m.T]
                pl.BlockSpec((1, 2 * H), lambda i: (0, 0)),     # [b_h | 0]
            ],
            out_specs=pl.BlockSpec((tile, 2 * H), lambda i: (i, 0)),
        ),
        compiler_params=pltpu.CompilerParams(
            dimension_semantics=("parallel",),
            vmem_limit_bytes=vmem_limit),
    )(x, wcat_t, bcat)

    heads = proj[:, :H]          # (Sp, H)
    modsT = proj[:, H:].T        # (H, Sp): mod axis lane-dense for the pairwise kernel

    w2_v = jnp.asarray(w2, f32).reshape(H)
    b2_v = jnp.asarray(b2, f32).reshape(1)

    # --- Pairwise scores over a (head-tile, mod-tile) grid ---
    scores = pl.pallas_call(
        _pairwise_kernel,
        out_shape=jax.ShapeDtypeStruct((Sp, Sp), f32),
        grid_spec=pltpu.PrefetchScalarGridSpec(
            num_scalar_prefetch=0,
            grid=(Sp // tile, Sp // tile),
            in_specs=[
                pl.BlockSpec((tile, H), lambda i, j: (i, 0)),   # heads rows
                pl.BlockSpec((H, tile), lambda i, j: (0, j)),   # mods columns (transposed)
                pl.BlockSpec(memory_space=pltpu.MemorySpace.SMEM),   # w2 (H,)
                pl.BlockSpec(memory_space=pltpu.MemorySpace.SMEM),   # b2 (1,)
            ],
            out_specs=pl.BlockSpec((tile, tile), lambda i, j: (i, j)),
        ),
        compiler_params=pltpu.CompilerParams(
            dimension_semantics=("parallel", "parallel"),
            vmem_limit_bytes=vmem_limit),
    )(heads, modsT, w2_v, b2_v)

    return scores[:S, :S]


def mlp_reference(lstm_out, w_h, b_h, w_m, w2, b2):
    heads = lstm_out @ w_h.T + b_h
    mods = lstm_out @ w_m.T
    z = jnp.maximum(heads[:, None, :] + mods[None, :, :], 0.0)
    scores = jnp.einsum("hmk,k->hm", z, w2[0]) + b2[0]
    S = scores.shape[0]
    return jnp.where(jnp.eye(S, dtype=bool), -jnp.inf, scores)


if __name__ == "__main__":
    S = 8             # sentence_length
    lstm_dim = 16
    mlp_hidden_dim = 32

    key = jax.random.PRNGKey(0)
    k_x, k_wh, k_bh, k_wm, k_w2, k_b2 = jax.random.split(key, 6)

    lstm_out = jax.random.normal(k_x, (S, lstm_dim), dtype=jnp.float32)

    # Parameters (shapes from the module __init__):
    #   fc_h: Linear(lstm_dim -> mlp_hidden_dim, bias=True)
    #   fc_m: Linear(lstm_dim -> mlp_hidden_dim, bias=False)
    #   second_mlp: Linear(mlp_hidden_dim -> 1, bias=True)
    w_h = 0.1 * jax.random.normal(k_wh, (mlp_hidden_dim, lstm_dim), dtype=jnp.float32)
    b_h = 0.1 * jax.random.normal(k_bh, (mlp_hidden_dim,), dtype=jnp.float32)
    w_m = 0.1 * jax.random.normal(k_wm, (mlp_hidden_dim, lstm_dim), dtype=jnp.float32)
    w2 = 0.1 * jax.random.normal(k_w2, (1, mlp_hidden_dim), dtype=jnp.float32)
    b2 = 0.1 * jax.random.normal(k_b2, (1,), dtype=jnp.float32)

    scores = mlp_forward(lstm_out, w_h, b_h, w_m, w2, b2)
    scores = jax.block_until_ready(scores)

    ref = mlp_reference(lstm_out, w_h, b_h, w_m, w2, b2)
    off = ~jnp.eye(S, dtype=bool)
    assert jnp.allclose(scores[off], ref[off], atol=1e-5, rtol=1e-5)
    assert bool(jnp.all(jnp.isneginf(jnp.diag(scores))))

    print("KERNEL_OK")
</pallas_src>

<mosaic_0001>
module attributes {stable_mosaic.version = 11 : i64} {
  func.func @_proj_kernel(%arg0: i32, %arg1: memref<128x16xf32, #tpu.memory_space<vmem>>, %arg2: memref<16x64xf32, #tpu.memory_space<vmem>>, %arg3: memref<1x64xf32, #tpu.memory_space<vmem>>, %arg4: memref<128x64xf32, #tpu.memory_space<vmem>>) attributes {dimension_semantics = [#tpu.dimension_semantics<parallel>], iteration_bounds = array<i64: 1>, scalar_prefetch = 0 : i64, scratch_operands = 0 : i64, tpu.core_type = #tpu.core_type<tc>, window_params = [{transform_indices = @transform_0, window_bounds = array<i64: 128, 16>}, {pipeline_mode = #tpu.pipeline_mode<synchronous>, transform_indices = @transform_1, window_bounds = array<i64: 16, 64>}, {pipeline_mode = #tpu.pipeline_mode<synchronous>, transform_indices = @transform_2, window_bounds = array<i64: 1, 64>}, {transform_indices = @transform_3, window_bounds = array<i64: 128, 64>}]} {
    %c0 = arith.constant 0 : index
    %c0_0 = arith.constant 0 : index
    %0 = vector.load %arg1[%c0, %c0_0] : memref<128x16xf32, #tpu.memory_space<vmem>>, vector<128x16xf32>
    %c0_1 = arith.constant 0 : index
    %c0_2 = arith.constant 0 : index
    %1 = vector.load %arg2[%c0_1, %c0_2] : memref<16x64xf32, #tpu.memory_space<vmem>>, vector<16x64xf32>
    %cst = arith.constant dense<0.000000e+00> : vector<128x64xf32>
    %2 = tpu.matmul %0, %1, %cst {dimension_numbers = #tpu.dot_dimension_numbers<[1], [0], [0], [1], [0, 0, 1, 1], [], []>} : vector<128x16xf32>, vector<16x64xf32>, vector<128x64xf32> -> vector<128x64xf32>
    %c0_3 = arith.constant 0 : index
    %c0_4 = arith.constant 0 : index
    %3 = vector.load %arg3[%c0_3, %c0_4] : memref<1x64xf32, #tpu.memory_space<vmem>>, vector<1x64xf32>
    %4 = vector.broadcast %3 : vector<1x64xf32> to vector<128x64xf32>
    %5 = arith.addf %2, %4 : vector<128x64xf32>
    %c0_5 = arith.constant 0 : index
    %c0_6 = arith.constant 0 : index
    %6 = vector.load %arg4[%c0_5, %c0_6] : memref<128x64xf32, #tpu.memory_space<vmem>>, vector<128x64xf32>
    tpu.vector_store %arg4[%c0_5, %c0_6], %5 {strides = array<i32>} : memref<128x64xf32, #tpu.memory_space<vmem>>, vector<128x64xf32>,
    return
  }
  func.func @transform_0(%arg0: i32) -> (i32, i32) {
    %c0_i32 = arith.constant 0 : i32
    %c0_i32_0 = arith.constant 0 : i32
    return %arg0, %c0_i32 : i32, i32
  }
  func.func @transform_1(%arg0: i32) -> (i32, i32) {
    %c0_i32 = arith.constant 0 : i32
    %c0_i32_0 = arith.constant 0 : i32
    %c0_i32_1 = arith.constant 0 : i32
    return %c0_i32, %c0_i32_0 : i32, i32
  }
  func.func @transform_2(%arg0: i32) -> (i32, i32) {
    %c0_i32 = arith.constant 0 : i32
    %c0_i32_0 = arith.constant 0 : i32
    %c0_i32_1 = arith.constant 0 : i32
    return %c0_i32, %c0_i32_0 : i32, i32
  }
  func.func @transform_3(%arg0: i32) -> (i32, i32) {
    %c0_i32 = arith.constant 0 : i32
    %c0_i32_0 = arith.constant 0 : i32
    return %arg0, %c0_i32 : i32, i32
  }
}

</mosaic_0001>

<llo_original>
// kernel: tpu_custom_call.1
$region0: #{tpu_custom_call.1}
  #allocation0 [shape = 'u32[]', space=smem, size = 0x4, offset = 0x4, fixed_abs, tag = 'smem constant byte address 0x4 - core index']
  #allocation1 [shape = 'u32[72,128]{1,0:T(1,128)}', space=vmem, size = 0x9000, scoped, tag = 'internal scratch']
  %s0 = inlined_call_operand.vmem [shape: f32[128,16], index: 0, kind: input, shape index: {}]
  %s1 = inlined_call_operand.vmem [shape: f32[16,64], index: 1, kind: input, shape index: {}]
  %s2 = inlined_call_operand.vmem [shape: f32[1,64], index: 2, kind: input, shape index: {}]
  %s3 = inlined_call_operand.vmem [shape: f32[128,64], index: 3, kind: output, shape index: {}]
  %s4 = sld [smem:[#allocation0]]
  $region22: #{tpu_custom_call.1} parent=0
    _
  %s6 = ssub.s32 1, %s4
  %s7 = scalar_select 0, %s6, %s4
  // Predicated region
  $region2: #{tpu_custom_call.1} parent=0 // pred_check
    _
  $region3: #{tpu_custom_call.1} parent=0 // pred_check_branch
    %9 = sbr.rel (0) target = $region5
  $region4: #{tpu_custom_call.1} parent=0 // pred_region
    _
  $region5: #{tpu_custom_call.1} parent=0 // pred_fallthru
    _
  // Predicated region
  $region6: #{tpu_custom_call.1} parent=0 // pred_check
    _
  $region7: #{tpu_custom_call.1} parent=0 // pred_check_branch
    %11 = sbr.rel (0) target = $region9
  $region8: #{tpu_custom_call.1} parent=0 // pred_region
    _
  $region9: #{tpu_custom_call.1} parent=0 // pred_fallthru
    _
  // Predicated region
  $region10: #{tpu_custom_call.1} parent=0 // pred_check
    _
  $region11: #{tpu_custom_call.1} parent=0 // pred_check_branch
    %13 = sbr.rel (0) target = $region13
  $region12: #{tpu_custom_call.1} parent=0 // pred_region
    _
  $region13: #{tpu_custom_call.1} parent=0 // pred_fallthru
    _
  %v14 = vld [vmem:[%s0] sm:$0xff]
  %v15 = vld [vmem:[%s0 + $0x8] sm:$0xff]
  %v16 = vld [vmem:[%s0 + $0x10] sm:$0xff]
  %v17 = vld [vmem:[%s0 + $0x18] sm:$0xff]
  %v18 = vld [vmem:[%s0 + $0x20] sm:$0xff]
  %v19 = vld [vmem:[%s0 + $0x28] sm:$0xff]
  %v20 = vld [vmem:[%s0 + $0x30] sm:$0xff]
  %v21 = vld [vmem:[%s0 + $0x38] sm:$0xff]
  %v22 = vld [vmem:[%s0 + $0x40] sm:$0xff]
  %v23 = vld [vmem:[%s0 + $0x48] sm:$0xff]
  %v24 = vld [vmem:[%s0 + $0x50] sm:$0xff]
  %v25 = vld [vmem:[%s0 + $0x58] sm:$0xff]
  %v26 = vld [vmem:[%s0 + $0x60] sm:$0xff]
  %v27 = vld [vmem:[%s0 + $0x68] sm:$0xff]
  %v28 = vld [vmem:[%s0 + $0x70] sm:$0xff]
  %v29 = vld [vmem:[%s0 + $0x78] sm:$0xff]
  %v30 = vld [vmem:[%s1] sm:$0xff]
  %v31 = vld [vmem:[%s1 + $0x8] sm:$0xff]
  %v32 = vld [vmem:[%s2] sm:$0x1]
  %v34 = vperm.slane %v32, 0
  %vm36 = vcmask 130048
  %v38 = vsel %vm36, %v14, 0
  %v41 = vsel %vm36, %v15, 0
  %v44 = vsel %vm36, %v16, 0
  %v47 = vsel %vm36, %v17, 0
  %v50 = vsel %vm36, %v18, 0
  %v53 = vsel %vm36, %v19, 0
  %v56 = vsel %vm36, %v20, 0
  %v59 = vsel %vm36, %v21, 0
  %v62 = vsel %vm36, %v22, 0
  %v65 = vsel %vm36, %v23, 0
  %v68 = vsel %vm36, %v24, 0
  %v71 = vsel %vm36, %v25, 0
  %v74 = vsel %vm36, %v26, 0
  %v77 = vsel %vm36, %v27, 0
  %v80 = vsel %vm36, %v28, 0
  %v83 = vsel %vm36, %v29, 0
  %85 = vmatpush.msra.mxu0 0.0
  %86 = vmatpush.msra.mxu0 0.0
  %87 = vmatpush.msra.mxu0 0.0
  %88 = vmatpush.msra.mxu0 0.0
  %89 = vmatpush.msra.mxu0 0.0
  %90 = vmatpush.msra.mxu0 0.0
  %91 = vmatpush.msra.mxu0 0.0
  %92 = vmatpush.msra.mxu0 0.0
  %93 = vmatpush.msra.mxu0 0.0
  %94 = vmatpush.msra.mxu0 0.0
  %95 = vmatpush.msra.mxu0 0.0
  %96 = vmatpush.msra.mxu0 0.0
  %97 = vmatpush.msra.mxu0 0.0
  %98 = vmatpush.msra.mxu0 0.0
  %99 = vmatpush.msra.mxu0 %v31
  %100 = vmatpush.msra.mxu0 %v30
  %101 = vmatmul.f32.gmra.mxu0 %v38
  %v102 = vpop.f32.mrf.mxu0
  %v103 = vadd.f32 %v34, %v102
  %104 = vmatmul.f32.gmra.mxu0 %v41
  %v105 = vpop.f32.mrf.mxu0
  %v106 = vadd.f32 %v34, %v105
  %107 = vmatmul.f32.gmra.mxu0 %v44
  %v108 = vpop.f32.mrf.mxu0
  %v109 = vadd.f32 %v34, %v108
  %110 = vmatmul.f32.gmra.mxu0 %v47
  %v111 = vpop.f32.mrf.mxu0
  %v112 = vadd.f32 %v34, %v111
  %113 = vmatmul.f32.gmra.mxu0 %v50
  %v114 = vpop.f32.mrf.mxu0
  %v115 = vadd.f32 %v34, %v114
  %116 = vmatmul.f32.gmra.mxu0 %v53
  %v117 = vpop.f32.mrf.mxu0
  %v118 = vadd.f32 %v34, %v117
  %119 = vmatmul.f32.gmra.mxu0 %v56
  %v120 = vpop.f32.mrf.mxu0
  %v121 = vadd.f32 %v34, %v120
  %122 = vmatmul.f32.gmra.mxu0 %v59
  %v123 = vpop.f32.mrf.mxu0
  %v124 = vadd.f32 %v34, %v123
  %125 = vmatmul.f32.gmra.mxu0 %v62
  %v126 = vpop.f32.mrf.mxu0
  %v127 = vadd.f32 %v34, %v126
  %128 = vmatmul.f32.gmra.mxu0 %v65
  %v129 = vpop.f32.mrf.mxu0
  %v130 = vadd.f32 %v34, %v129
  %131 = vmatmul.f32.gmra.mxu0 %v68
  %v132 = vpop.f32.mrf.mxu0
  %v133 = vadd.f32 %v34, %v132
  %134 = vmatmul.f32.gmra.mxu0 %v71
  %v135 = vpop.f32.mrf.mxu0
  %v136 = vadd.f32 %v34, %v135
  %137 = vmatmul.f32.gmra.mxu0 %v74
  %v138 = vpop.f32.mrf.mxu0
  %v139 = vadd.f32 %v34, %v138
  %140 = vmatmul.f32.gmra.mxu0 %v77
  %v141 = vpop.f32.mrf.mxu0
  %v142 = vadd.f32 %v34, %v141
  %143 = vmatmul.f32.gmra.mxu0 %v80
  %v144 = vpop.f32.mrf.mxu0
  %v145 = vadd.f32 %v34, %v144
  %146 = vmatmul.f32.gmra.mxu0 %v83
  %v147 = vpop.f32.mrf.mxu0
  %v148 = vadd.f32 %v34, %v147
  %149 = vdwg.mxu0
  %vm150 = vcmask 523264
  %151 = vst.msk [vmem:[%s3] sm:$0xff] %vm150, %v103
  %152 = vst.msk [vmem:[%s3 + $0x8] sm:$0xff] %vm150, %v106
  %153 = vst.msk [vmem:[%s3 + $0x10] sm:$0xff] %vm150, %v109
  %154 = vst.msk [vmem:[%s3 + $0x18] sm:$0xff] %vm150, %v112
  %155 = vst.msk [vmem:[%s3 + $0x20] sm:$0xff] %vm150, %v115
  %156 = vst.msk [vmem:[%s3 + $0x28] sm:$0xff] %vm150, %v118
  %157 = vst.msk [vmem:[%s3 + $0x30] sm:$0xff] %vm150, %v121
  %158 = vst.msk [vmem:[%s3 + $0x38] sm:$0xff] %vm150, %v124
  %159 = vst.msk [vmem:[%s3 + $0x40] sm:$0xff] %vm150, %v127
  %160 = vst.msk [vmem:[%s3 + $0x48] sm:$0xff] %vm150, %v130
  %161 = vst.msk [vmem:[%s3 + $0x50] sm:$0xff] %vm150, %v133
  %162 = vst.msk [vmem:[%s3 + $0x58] sm:$0xff] %vm150, %v136
  %163 = vst.msk [vmem:[%s3 + $0x60] sm:$0xff] %vm150, %v139
  %164 = vst.msk [vmem:[%s3 + $0x68] sm:$0xff] %vm150, %v142
  %165 = vst.msk [vmem:[%s3 + $0x70] sm:$0xff] %vm150, %v145
  %166 = vst.msk [vmem:[%s3 + $0x78] sm:$0xff] %vm150, %v148
  // Predicated region
  $region14: #{tpu_custom_call.1} parent=0 // pred_check
    _
  $region15: #{tpu_custom_call.1} parent=0 // pred_check_branch
    %168 = sbr.rel (0) target = $region17
  $region16: #{tpu_custom_call.1} parent=0 // pred_region
    _
  $region17: #{tpu_custom_call.1} parent=0 // pred_fallthru
    _
  // Predicated region
  $region18: #{tpu_custom_call.1} parent=0 // pred_check
    _
  $region19: #{tpu_custom_call.1} parent=0 // pred_check_branch
    %170 = sbr.rel (0) target = $region21
  $region20: #{tpu_custom_call.1} parent=0 // pred_region
    _
  $region21: #{tpu_custom_call.1} parent=0 // pred_fallthru
    _

</llo_original>
